<compile_context>
chip_gen: v6e
topology: v6e:2x2x1
jax: 0.10.0
libtpu: 0.0.40
codegen_flags: <defaults>
</compile_context>

<pallas_src>
import jax
import jax.numpy as jnp
from jax.experimental import pallas as pl
from jax.experimental.pallas import tpu as pltpu


def _round_up(n, m):
    return ((n + m - 1) // m) * m


def combined_kernel(x_ref, w12_ref, b12_ref, wc_ref, bc_ref, o_ref):
    # x_ref: (TILE_B, C, H*W); spatial axis sits on lanes -> XLU lane reduction.
    # Keep the pooling reduction in f32 regardless of storage dtype (v5e lacks bf16 VPU).
    pooled = jnp.sum(x_ref[...].astype(jnp.float32), axis=-1)          # (TILE_B, C) f32

    # Fused model1|model2 feature matmul; the 1/(H*W) mean scale is folded into w12.
    feats = jnp.dot(pooled.astype(w12_ref.dtype), w12_ref[...],
                    preferred_element_type=jnp.float32) + b12_ref[...]
    feats = jnp.maximum(feats, 0.0)                                     # (TILE_B, 1024) f32

    # Classifier: Linear(1024, num_classes), padded to a lane-dense output width.
    out = jnp.dot(feats.astype(wc_ref.dtype), wc_ref[...],
                  preferred_element_type=jnp.float32) + bc_ref[...]
    o_ref[...] = out.astype(o_ref.dtype)


def combined_model_forward(x, params, *, compute_dtype=jnp.float32, tile_b=None):
    """x: (B, C, H, W) float32 NCHW. Returns (B, num_classes) float32."""
    B, C, H, W = x.shape
    w1, b1, w2, b2, wc, bc = params
    feat2 = w1.shape[1] + w2.shape[1]            # 1024
    num_classes = wc.shape[1]
    HW = H * W

    # ---- one-time parameter prep (outside the hot loop) ---------------------
    # Fuse the two feature projections and fold in the global-average-pool scale.
    w12 = (jnp.concatenate([w1, w2], axis=1) * (1.0 / HW)).astype(compute_dtype)   # (C, 1024)
    b12 = jnp.concatenate([b1, b2], axis=0).reshape(1, feat2).astype(jnp.float32)  # (1, 1024)

    # Lane-dense classifier output: pad columns up to a multiple of 128.
    n_pad = _round_up(max(num_classes, 1), 128)
    wc_p = jnp.zeros((feat2, n_pad), jnp.float32).at[:, :num_classes].set(wc)
    bc_p = jnp.zeros((1, n_pad), jnp.float32).at[:, :num_classes].set(bc)
    wc_p = wc_p.astype(compute_dtype)

    # ---- input prep / batch tiling ------------------------------------------
    x_flat = x.reshape(B, C, HW).astype(compute_dtype)

    if tile_b is None:
        # Keep each x tile <= ~4 MiB so 2x (double buffer) + resident weights fit the
        # default scoped-VMEM limit on every generation.
        row_bytes = C * HW * jnp.dtype(compute_dtype).itemsize
        cap = max(8, ((4 << 20) // max(row_bytes, 1)) // 8 * 8)
        tile_b = min(256, _round_up(B, 8), cap)
    tile_b = max(8, _round_up(tile_b, 8))
    # TODO(synk): if C*H*W is so large that even an 8-row tile exceeds VMEM, add a second
    # "arbitrary" grid axis over the spatial dim with a pooled-sum VMEM accumulator.

    b_pad = _round_up(B, tile_b)
    if b_pad != B:
        x_flat = jnp.pad(x_flat, ((0, b_pad - B), (0, 0), (0, 0)))
    nb = b_pad // tile_b

    itemsize = jnp.dtype(compute_dtype).itemsize
    cost = pl.CostEstimate(
        flops=2 * b_pad * C * feat2 + 2 * b_pad * feat2 * n_pad + b_pad * C * HW,
        transcendentals=0,
        bytes_accessed=(b_pad * C * HW * itemsize               # x
                        + C * feat2 * itemsize                  # fused feature weight
                        + feat2 * n_pad * itemsize              # classifier weight
                        + (feat2 + n_pad) * 4                   # biases (f32)
                        + b_pad * n_pad * 4),                   # output (f32)
    )

    out = pl.pallas_call(
        combined_kernel,
        out_shape=jax.ShapeDtypeStruct((b_pad, n_pad), jnp.float32),
        grid_spec=pltpu.PrefetchScalarGridSpec(
            num_scalar_prefetch=0,
            grid=(nb,),
            in_specs=[
                pl.BlockSpec((tile_b, C, HW), lambda i: (i, 0, 0)),   # streamed x (double-buffered)
                pl.BlockSpec((C, feat2), lambda i: (0, 0)),           # resident fused weight
                pl.BlockSpec((1, feat2), lambda i: (0, 0)),           # resident fused bias
                pl.BlockSpec((feat2, n_pad), lambda i: (0, 0)),       # resident classifier weight
                pl.BlockSpec((1, n_pad), lambda i: (0, 0)),           # resident classifier bias
            ],
            out_specs=pl.BlockSpec((tile_b, n_pad), lambda i: (i, 0)),
        ),
        compiler_params=pltpu.CompilerParams(
            dimension_semantics=("parallel",),   # shard batch tiles across v7x's 2 TensorCores
        ),
        cost_estimate=cost,
    )(x_flat, w12, b12, wc_p, bc_p)

    return out[:B, :num_classes]


def init_params(key, in_channels, num_classes, feat_dim=512):
    k1, k2, k3, k4, k5, k6 = jax.random.split(key, 6)
    w1 = jax.random.normal(k1, (in_channels, feat_dim), jnp.float32) * 0.05
    b1 = jax.random.normal(k2, (feat_dim,), jnp.float32) * 0.05
    w2 = jax.random.normal(k3, (in_channels, feat_dim), jnp.float32) * 0.05
    b2 = jax.random.normal(k4, (feat_dim,), jnp.float32) * 0.05
    wc = jax.random.normal(k5, (2 * feat_dim, num_classes), jnp.float32) * 0.05
    bc = jax.random.normal(k6, (num_classes,), jnp.float32) * 0.05
    return (w1, b1, w2, b2, wc, bc)


def reference_forward(x, params):
    """Pure-JAX reference with identical semantics to the PyTorch module."""
    w1, b1, w2, b2, wc, bc = params
    pooled = x.mean(axis=(2, 3))                       # (B, C)
    f1 = jnp.maximum(pooled @ w1 + b1, 0.0)
    f2 = jnp.maximum(pooled @ w2 + b2, 0.0)
    feats = jnp.concatenate([f1, f2], axis=1)
    return feats @ wc + bc


if __name__ == "__main__":
    key = jax.random.PRNGKey(0)
    kx, kp = jax.random.split(key)

    B, C, H, W = 2, 4, 16, 16
    num_classes = 10

    x = jax.random.normal(kx, (B, C, H, W), jnp.float32)
    params = init_params(kp, C, num_classes)
    ref = reference_forward(x, params)

    # f32 path: tight check vs reference.
    out_f32 = jax.block_until_ready(
        combined_model_forward(x, params, compute_dtype=jnp.float32))
    assert out_f32.shape == (B, num_classes)
    assert jnp.allclose(out_f32, ref, atol=1e-4, rtol=1e-4), "f32 mismatch vs reference"

    # bf16 MXU-operand path (halves HBM traffic on x); f32 accumulate -> loose tolerance.
    out_bf16 = jax.block_until_ready(
        combined_model_forward(x, params, compute_dtype=jnp.bfloat16))
    assert out_bf16.shape == (B, num_classes)
    assert jnp.allclose(out_bf16, ref, atol=2e-2, rtol=2e-2), "bf16 mismatch vs reference"

    print("KERNEL_OK")
</pallas_src>

<mosaic_0001>
module attributes {stable_mosaic.version = 11 : i64} {
  func.func @combined_kernel(%arg0: i32, %arg1: memref<8x4x256xf32, #tpu.memory_space<vmem>>, %arg2: memref<4x1024xf32, #tpu.memory_space<vmem>>, %arg3: memref<1x1024xf32, #tpu.memory_space<vmem>>, %arg4: memref<1024x128xf32, #tpu.memory_space<vmem>>, %arg5: memref<1x128xf32, #tpu.memory_space<vmem>>, %arg6: memref<8x128xf32, #tpu.memory_space<vmem>>) attributes {dimension_semantics = [#tpu.dimension_semantics<parallel>], iteration_bounds = array<i64: 1>, scalar_prefetch = 0 : i64, scratch_operands = 0 : i64, tpu.core_type = #tpu.core_type<tc>, window_params = [{transform_indices = @transform_0, window_bounds = array<i64: 8, 4, 256>}, {pipeline_mode = #tpu.pipeline_mode<synchronous>, transform_indices = @transform_1, window_bounds = array<i64: 4, 1024>}, {pipeline_mode = #tpu.pipeline_mode<synchronous>, transform_indices = @transform_2, window_bounds = array<i64: 1, 1024>}, {pipeline_mode = #tpu.pipeline_mode<synchronous>, transform_indices = @transform_3, window_bounds = array<i64: 1024, 128>}, {pipeline_mode = #tpu.pipeline_mode<synchronous>, transform_indices = @transform_4, window_bounds = array<i64: 1, 128>}, {transform_indices = @transform_5, window_bounds = array<i64: 8, 128>}]} {
    %c0 = arith.constant 0 : index
    %c0_0 = arith.constant 0 : index
    %c0_1 = arith.constant 0 : index
    %0 = vector.load %arg1[%c0, %c0_0, %c0_1] : memref<8x4x256xf32, #tpu.memory_space<vmem>>, vector<8x4x256xf32>
    %cst = arith.constant dense<0.000000e+00> : vector<8x4xf32>
    %1 = vector.multi_reduction <add>, %0, %cst [2] : vector<8x4x256xf32> to vector<8x4xf32>
    %c0_2 = arith.constant 0 : index
    %c0_3 = arith.constant 0 : index
    %2 = vector.load %arg2[%c0_2, %c0_3] : memref<4x1024xf32, #tpu.memory_space<vmem>>, vector<4x1024xf32>
    %cst_4 = arith.constant dense<0.000000e+00> : vector<8x1024xf32>
    %3 = tpu.matmul %1, %2, %cst_4 {dimension_numbers = #tpu.dot_dimension_numbers<[1], [0], [0], [1], [0, 0, 1, 1], [], []>} : vector<8x4xf32>, vector<4x1024xf32>, vector<8x1024xf32> -> vector<8x1024xf32>
    %c0_5 = arith.constant 0 : index
    %c0_6 = arith.constant 0 : index
    %4 = vector.load %arg3[%c0_5, %c0_6] : memref<1x1024xf32, #tpu.memory_space<vmem>>, vector<1x1024xf32>
    %5 = vector.broadcast %4 : vector<1x1024xf32> to vector<8x1024xf32>
    %6 = arith.addf %3, %5 : vector<8x1024xf32>
    %cst_7 = arith.constant 0.000000e+00 : f32
    %7 = vector.broadcast %cst_7 : f32 to vector<8x1024xf32>
    %8 = arith.maximumf %6, %7 : vector<8x1024xf32>
    %c0_8 = arith.constant 0 : index
    %c0_9 = arith.constant 0 : index
    %9 = vector.load %arg4[%c0_8, %c0_9] : memref<1024x128xf32, #tpu.memory_space<vmem>>, vector<1024x128xf32>
    %cst_10 = arith.constant dense<0.000000e+00> : vector<8x128xf32>
    %10 = tpu.matmul %8, %9, %cst_10 {dimension_numbers = #tpu.dot_dimension_numbers<[1], [0], [0], [1], [0, 0, 1, 1], [], []>} : vector<8x1024xf32>, vector<1024x128xf32>, vector<8x128xf32> -> vector<8x128xf32>
    %c0_11 = arith.constant 0 : index
    %c0_12 = arith.constant 0 : index
    %11 = vector.load %arg5[%c0_11, %c0_12] : memref<1x128xf32, #tpu.memory_space<vmem>>, vector<1x128xf32>
    %12 = vector.broadcast %11 : vector<1x128xf32> to vector<8x128xf32>
    %13 = arith.addf %10, %12 : vector<8x128xf32>
    %c0_13 = arith.constant 0 : index
    %c0_14 = arith.constant 0 : index
    %14 = vector.load %arg6[%c0_13, %c0_14] : memref<8x128xf32, #tpu.memory_space<vmem>>, vector<8x128xf32>
    tpu.vector_store %arg6[%c0_13, %c0_14], %13 {strides = array<i32>} : memref<8x128xf32, #tpu.memory_space<vmem>>, vector<8x128xf32>,
    return
  }
  func.func @transform_0(%arg0: i32) -> (i32, i32, i32) {
    %c0_i32 = arith.constant 0 : i32
    %c0_i32_0 = arith.constant 0 : i32
    %c0_i32_1 = arith.constant 0 : i32
    return %arg0, %c0_i32, %c0_i32_0 : i32, i32, i32
  }
  func.func @transform_1(%arg0: i32) -> (i32, i32) {
    %c0_i32 = arith.constant 0 : i32
    %c0_i32_0 = arith.constant 0 : i32
    %c0_i32_1 = arith.constant 0 : i32
    return %c0_i32, %c0_i32_0 : i32, i32
  }
  func.func @transform_2(%arg0: i32) -> (i32, i32) {
    %c0_i32 = arith.constant 0 : i32
    %c0_i32_0 = arith.constant 0 : i32
    %c0_i32_1 = arith.constant 0 : i32
    return %c0_i32, %c0_i32_0 : i32, i32
  }
  func.func @transform_3(%arg0: i32) -> (i32, i32) {
    %c0_i32 = arith.constant 0 : i32
    %c0_i32_0 = arith.constant 0 : i32
    %c0_i32_1 = arith.constant 0 : i32
    return %c0_i32, %c0_i32_0 : i32, i32
  }
  func.func @transform_4(%arg0: i32) -> (i32, i32) {
    %c0_i32 = arith.constant 0 : i32
    %c0_i32_0 = arith.constant 0 : i32
    %c0_i32_1 = arith.constant 0 : i32
    return %c0_i32, %c0_i32_0 : i32, i32
  }
  func.func @transform_5(%arg0: i32) -> (i32, i32) {
    %c0_i32 = arith.constant 0 : i32
    %c0_i32_0 = arith.constant 0 : i32
    return %arg0, %c0_i32 : i32, i32
  }
}

</mosaic_0001>

<llo_original>
// kernel: tpu_custom_call.1
$region0: #{tpu_custom_call.1}
  #allocation0 [shape = 'u32[]', space=smem, size = 0x4, offset = 0x4, fixed_abs, tag = 'smem constant byte address 0x4 - core index']
  #allocation1 [shape = 'u32[144,128]{1,0:T(1,128)}', space=vmem, size = 0x12000, scoped, tag = 'internal scratch']
  %s0 = inlined_call_operand.hbm [shape: f32[8,4,256], index: 0, kind: input, shape index: {}]
  %s1 = inlined_call_operand.hbm [shape: f32[4,1024], index: 1, kind: input, shape index: {}]
  %s2 = inlined_call_operand.hbm [shape: f32[1,1024], index: 2, kind: input, shape index: {}]
  %s3 = inlined_call_operand.hbm [shape: f32[1024,128], index: 3, kind: input, shape index: {}]
  %s4 = inlined_call_operand.vmem [shape: f32[1,128], index: 4, kind: input, shape index: {}]
  %s5 = inlined_call_operand.hbm [shape: f32[8,128], index: 5, kind: output, shape index: {}]
  %s6 = sld [smem:[#allocation0]]
  $region46: #{tpu_custom_call.1} parent=0
    _
  %s8 = ssub.s32 1, %s6
  %s9 = scalar_select 0, %s8, %s6
  $region1: #{tpu_custom_call.1} parent=0
    #allocation2 [shape = 'u8[32768]{0}', space=vmem, size = 0x8000, scoped, tag = 'input window, operand 0, single buffered']
    #allocation3 [shape = 's32[1]{0}', space=sflag, size = 0x4, scoped, tag = 'scoped memory for tpu_custom_call.1']
    #allocation4 [shape = 's32[1]{0}', space=sflag, size = 0x4, scoped, tag = 'scoped memory for tpu_custom_call.1']
    #allocation5 [shape = 'u8[16384]{0}', space=vmem, size = 0x4000, scoped, tag = 'input window, operand 1, single buffered']
    #allocation6 [shape = 's32[1]{0}', space=sflag, size = 0x4, scoped, tag = 'scoped memory for tpu_custom_call.1']
    #allocation7 [shape = 'u8[4096]{0}', space=vmem, size = 0x1000, scoped, tag = 'input window, operand 2, single buffered']
    #allocation8 [shape = 'u8[524288]{0}', space=vmem, size = 0x80000, scoped, tag = 'input window, operand 3, single buffered']
    #allocation9 [shape = 's32[1]{0}', space=sflag, size = 0x4, scoped, tag = 'scoped memory for tpu_custom_call.1']
    #allocation10 [shape = 'u8[4096]{0}', space=vmem, size = 0x1000, scoped, tag = 'output window, operand 0, single buffered']
    %10 = vsyncpa [#allocation3], 0
    %11 = vsyncpa [#allocation6], 0
    %12 = vsyncpa [#allocation9], 0
    %13 = vsyncpa [#allocation4], 0
    // Predicated region
    $region2: #{tpu_custom_call.1} parent=1 // pred_check
      _
    $region3: #{tpu_custom_call.1} parent=1 // pred_check_branch
      %15 = sbr.rel (0) target = $region5
    $region4: #{tpu_custom_call.1} parent=1 // pred_region
      %s17 = ssub.s32 1024, 1024
      %18 = vsyncadd [#allocation3], %s17
      %s19 = sshll.u32 [#allocation2], 4
      %s20 = int_to_ptr.vmem [resolvable:$true] %s19
      %25 = dma.hbm_to_vmem [thread:$0]  %s0, 1024, %s20, [#allocation3], 128, 128, 8
    $region5: #{tpu_custom_call.1} parent=1 // pred_fallthru
      _
    // Predicated region
    $region6: #{tpu_custom_call.1} parent=1 // pred_check
      _
    $region7: #{tpu_custom_call.1} parent=1 // pred_check_branch
      %27 = sbr.rel (0) target = $region9
    $region8: #{tpu_custom_call.1} parent=1 // pred_region
      %s29 = ssub.s32 512, 512
      %30 = vsyncadd [#allocation6], %s29
      %s32 = sshll.u32 [#allocation5], 4
      %s33 = int_to_ptr.vmem [resolvable:$true] %s32
      %35 = dma.hbm_to_vmem [thread:$0]  %s1, 512, %s33, [#allocation6]
    $region9: #{tpu_custom_call.1} parent=1 // pred_fallthru
      _
    // Predicated region
    $region10: #{tpu_custom_call.1} parent=1 // pred_check
      _
    $region11: #{tpu_custom_call.1} parent=1 // pred_check_branch
      %37 = sbr.rel (0) target = $region13
    $region12: #{tpu_custom_call.1} parent=1 // pred_region
      %s39 = ssub.s32 128, 128
      %40 = vsyncadd [#allocation6], %s39
      %s42 = sshll.u32 [#allocation7], 4
      %s43 = int_to_ptr.vmem [resolvable:$true] %s42
      %45 = dma.hbm_to_vmem [thread:$0]  %s2, 128, %s43, [#allocation6]
    $region13: #{tpu_custom_call.1} parent=1 // pred_fallthru
      _
    // Predicated region
    $region14: #{tpu_custom_call.1} parent=1 // pred_check
      _
    $region15: #{tpu_custom_call.1} parent=1 // pred_check_branch
      %47 = sbr.rel (0) target = $region17
    $region16: #{tpu_custom_call.1} parent=1 // pred_region
      %s49 = ssub.s32 16384, 16384
      %50 = vsyncadd [#allocation9], %s49
      %s51 = sshll.u32 [#allocation8], 4
      %s52 = int_to_ptr.vmem [resolvable:$true] %s51
      %57 = dma.hbm_to_vmem [thread:$0]  %s3, 16384, %s52, [#allocation9], 128, 128, 8
    $region17: #{tpu_custom_call.1} parent=1 // pred_fallthru
      _
    // Predicated region
    $region18: #{tpu_custom_call.1} parent=1 // pred_check
      _
    $region19: #{tpu_custom_call.1} parent=1 // pred_check_branch
      %59 = sbr.rel (0) target = $region21
    $region20: #{tpu_custom_call.1} parent=1 // pred_region
      _
    $region21: #{tpu_custom_call.1} parent=1 // pred_fallthru
      _
    // Predicated region
    $region22: #{tpu_custom_call.1} parent=1 // pred_check
      _
    $region23: #{tpu_custom_call.1} parent=1 // pred_check_branch
      %61 = sbr.rel (0) target = $region25
    $region24: #{tpu_custom_call.1} parent=1 // pred_region
      %62 = dma.done [#allocation3], 1024
    $region25: #{tpu_custom_call.1} parent=1 // pred_fallthru
      _
    // Predicated region
    $region26: #{tpu_custom_call.1} parent=1 // pred_check
      _
    $region27: #{tpu_custom_call.1} parent=1 // pred_check_branch
      %64 = sbr.rel (0) target = $region29
    $region28: #{tpu_custom_call.1} parent=1 // pred_region
      %65 = dma.done [#allocation6], 512
    $region29: #{tpu_custom_call.1} parent=1 // pred_fallthru
      _
    // Predicated region
    $region30: #{tpu_custom_call.1} parent=1 // pred_check
      _
    $region31: #{tpu_custom_call.1} parent=1 // pred_check_branch
      %67 = sbr.rel (0) target = $region33
    $region32: #{tpu_custom_call.1} parent=1 // pred_region
      %68 = dma.done [#allocation6], 128
    $region33: #{tpu_custom_call.1} parent=1 // pred_fallthru
      _
    // Predicated region
    $region34: #{tpu_custom_call.1} parent=1 // pred_check
      _
    $region35: #{tpu_custom_call.1} parent=1 // pred_check_branch
      %70 = sbr.rel (0) target = $region37
    $region36: #{tpu_custom_call.1} parent=1 // pred_region
      %71 = dma.done [#allocation9], 16384
    $region37: #{tpu_custom_call.1} parent=1 // pred_fallthru
      _
    %v72 = vld [vmem:[#allocation2] sm:$0xff]
    %v73 = vld [vmem:[#allocation2 + $0x8] sm:$0xff]
    %v74 = vld [vmem:[#allocation2 + $0x10] sm:$0xff]
    %v75 = vld [vmem:[#allocation2 + $0x18] sm:$0xff]
    %v76 = vld [vmem:[#allocation2 + $0x20] sm:$0xff]
    %v77 = vld [vmem:[#allocation2 + $0x28] sm:$0xff]
    %v78 = vld [vmem:[#allocation2 + $0x30] sm:$0xff]
    %v79 = vld [vmem:[#allocation2 + $0x38] sm:$0xff]
    %v88 = vcombine.high %v72, %v72
    %v89 = vcombine.high %v73, %v73
    %v90 = vcombine.high %v74, %v74
    %v91 = vcombine.high %v75, %v75
    %v92 = vcombine.high %v76, %v76
    %v93 = vcombine.high %v77, %v77
    %v94 = vcombine.high %v78, %v78
    %v95 = vcombine.high %v79, %v79
    %vm104 = vcmask 1043456
    %v105 = vsel %vm104, %v72, 0.0
    %v106 = vsel %vm104, %v88, 0.0
    %v107 = vadd.f32 %v105, %v106
    %108 = vadd.xlane.f32.xlu0 %v107
    %v109 = vpop.xlane.xlu0 %108
    %v110 = vsel %vm104, %v73, 0.0
    %v111 = vsel %vm104, %v89, 0.0
    %v112 = vadd.f32 %v110, %v111
    %113 = vadd.xlane.f32.xlu0 %v112
    %v114 = vpop.xlane.xlu0 %113
    %v115 = vsel %vm104, %v74, 0.0
    %v116 = vsel %vm104, %v90, 0.0
    %v117 = vadd.f32 %v115, %v116
    %118 = vadd.xlane.f32.xlu0 %v117
    %v119 = vpop.xlane.xlu0 %118
    %v120 = vsel %vm104, %v75, 0.0
    %v121 = vsel %vm104, %v91, 0.0
    %v122 = vadd.f32 %v120, %v121
    %123 = vadd.xlane.f32.xlu0 %v122
    %v124 = vpop.xlane.xlu0 %123
    %v125 = vsel %vm104, %v76, 0.0
    %v126 = vsel %vm104, %v92, 0.0
    %v127 = vadd.f32 %v125, %v126
    %128 = vadd.xlane.f32.xlu0 %v127
    %v129 = vpop.xlane.xlu0 %128
    %v130 = vsel %vm104, %v77, 0.0
    %v131 = vsel %vm104, %v93, 0.0
    %v132 = vadd.f32 %v130, %v131
    %133 = vadd.xlane.f32.xlu0 %v132
    %v134 = vpop.xlane.xlu0 %133
    %v135 = vsel %vm104, %v78, 0.0
    %v136 = vsel %vm104, %v94, 0.0
    %v137 = vadd.f32 %v135, %v136
    %138 = vadd.xlane.f32.xlu0 %v137
    %v139 = vpop.xlane.xlu0 %138
    %v140 = vsel %vm104, %v79, 0.0
    %v141 = vsel %vm104, %v95, 0.0
    %v142 = vadd.f32 %v140, %v141
    %143 = vadd.xlane.f32.xlu0 %v142
    %v144 = vpop.xlane.xlu0 %143
    %v145 = vld [vmem:[#allocation5] sm:$0xff]
    %v146 = vld [vmem:[#allocation5 + $0x8] sm:$0xff]
    %v147 = vld [vmem:[#allocation5 + $0x10] sm:$0xff]
    %v148 = vld [vmem:[#allocation5 + $0x18] sm:$0xff]
    %v149 = vld [vmem:[#allocation7] sm:$0xff]
    %v151 = vlaneseq
    %v152 = vshrl.u32 %v151, 7
    %v153 = vsub.s32 0, %v152
    %v154 = vrot.slane %v149, %v153
    %v155 = vlaneseq
    %v156 = vshrl.u32 %v155, 7
    %v157 = vsub.s32 1, %v156
    %v158 = vrot.slane %v149, %v157
    %v159 = vlaneseq
    %v160 = vshrl.u32 %v159, 7
    %v161 = vsub.s32 2, %v160
    %v162 = vrot.slane %v149, %v161
    %v163 = vlaneseq
    %v164 = vshrl.u32 %v163, 7
    %v165 = vsub.s32 3, %v164
    %v166 = vrot.slane %v149, %v165
    %v167 = vlaneseq
    %v168 = vshrl.u32 %v167, 7
    %v169 = vsub.s32 4, %v168
    %v170 = vrot.slane %v149, %v169
    %v171 = vlaneseq
    %v172 = vshrl.u32 %v171, 7
    %v173 = vsub.s32 5, %v172
    %v174 = vrot.slane %v149, %v173
    %v175 = vlaneseq
    %v176 = vshrl.u32 %v175, 7
    %v177 = vsub.s32 6, %v176
    %v178 = vrot.slane %v149, %v177
    %v179 = vlaneseq
    %v180 = vshrl.u32 %v179, 7
    %v181 = vsub.s32 7, %v180
    %v182 = vrot.slane %v149, %v181
    %v199 = vlaneseq
    %v200 = vand.u32 %v199, 127
    %v201 = vlaneseq
    %v202 = vshrl.u32 %v201, 7
    %v203 = vsub.s32 %v200, %v202
    %v204 = vrot.slane %v109, %v203
    %v205 = vlaneseq
    %v206 = vshrl.u32 %v205, 7
    %v207 = vsub.s32 %v200, %v206
    %v208 = vrot.slane %v114, %v207
    %v209 = vlaneseq
    %v210 = vshrl.u32 %v209, 7
    %v211 = vsub.s32 %v200, %v210
    %v212 = vrot.slane %v119, %v211
    %v213 = vlaneseq
    %v214 = vshrl.u32 %v213, 7
    %v215 = vsub.s32 %v200, %v214
    %v216 = vrot.slane %v124, %v215
    %v217 = vlaneseq
    %v218 = vshrl.u32 %v217, 7
    %v219 = vsub.s32 %v200, %v218
    %v220 = vrot.slane %v129, %v219
    %v221 = vlaneseq
    %v222 = vshrl.u32 %v221, 7
    %v223 = vsub.s32 %v200, %v222
    %v224 = vrot.slane %v134, %v223
    %v225 = vlaneseq
    %v226 = vshrl.u32 %v225, 7
    %v227 = vsub.s32 %v200, %v226
    %v228 = vrot.slane %v139, %v227
    %v229 = vlaneseq
    %v230 = vshrl.u32 %v229, 7
    %v231 = vsub.s32 %v200, %v230
    %v232 = vrot.slane %v144, %v231
    %vm233 = vcmask 1041409
    %v234 = vsel %vm233, %v208, %v204
    %vm235 = vcmask 1042434
    %v236 = vsel %vm235, %v212, %v234
    %vm237 = vcmask 1043459
    %v238 = vsel %vm237, %v216, %v236
    %vm239 = vcmask 1044484
    %v240 = vsel %vm239, %v220, %v238
    %vm241 = vcmask 1045509
    %v242 = vsel %vm241, %v224, %v240
    %vm243 = vcmask 1046534
    %v244 = vsel %vm243, %v228, %v242
    %vm245 = vcmask 1047559
    %v246 = vsel %vm245, %v232, %v244
    %v251 = vcombine.high %v145, %v145
    %v252 = vcombine.high %v146, %v146
    %v253 = vcombine.high %v147, %v147
    %v254 = vcombine.high %v148, %v148
    %vm255 = vcmask 31744
    %v256 = vsel %vm255, %v246, 0
    %v258 = vsel %vm104, %v145, 0
    %v260 = vsel %vm104, %v251, 0
    %v262 = vsel %vm104, %v146, 0
    %v264 = vsel %vm104, %v252, 0
    %v266 = vsel %vm104, %v147, 0
    %v268 = vsel %vm104, %v253, 0
    %v270 = vsel %vm104, %v148, 0
    %v272 = vsel %vm104, %v254, 0
    %274 = vmatprep.subr.mxu0 0.0
    %275 = vmatpush1.msra.mxu0 0.0
    %276 = vmatprep.subr.mxu0 0.0
    %277 = vmatpush1.msra.mxu0 0.0
    %278 = vmatprep.subr.mxu0 0.0
    %279 = vmatpush1.msra.mxu0 0.0
    %280 = vmatprep.subr.mxu0 0.0
    %281 = vmatpush1.msra.mxu0 0.0
    %282 = vmatprep.subr.mxu0 0.0
    %283 = vmatpush1.msra.mxu0 0.0
    %284 = vmatprep.subr.mxu0 0.0
    %285 = vmatpush1.msra.mxu0 0.0
    %286 = vmatprep.subr.mxu0 0.0
    %287 = vmatpush1.msra.mxu0 0.0
    %288 = vmatprep.subr.mxu0 0.0
    %289 = vmatpush1.msra.mxu0 0.0
    %290 = vmatprep.subr.mxu0 0.0
    %291 = vmatpush1.msra.mxu0 0.0
    %292 = vmatprep.subr.mxu0 0.0
    %293 = vmatpush1.msra.mxu0 0.0
    %294 = vmatprep.subr.mxu0 0.0
    %295 = vmatpush1.msra.mxu0 0.0
    %296 = vmatprep.subr.mxu0 0.0
    %297 = vmatpush1.msra.mxu0 0.0
    %298 = vmatprep.subr.mxu0 0.0
    %299 = vmatpush1.msra.mxu0 0.0
    %300 = vmatprep.subr.mxu0 0.0
    %301 = vmatpush1.msra.mxu0 0.0
    %302 = vmatprep.subr.mxu0 0.0
    %303 = vmatpush1.msra.mxu0 0.0
    %304 = vmatprep.subr.mxu0 %v260
    %305 = vmatpush1.msra.mxu0 %v258
    %306 = vmatprep.subr.mxu0 0.0
    %307 = vmatpush2.msra.mxu0 0.0
    %308 = vmatprep.subr.mxu0 0.0
    %309 = vmatpush2.msra.mxu0 0.0
    %310 = vmatprep.subr.mxu0 0.0
    %311 = vmatpush2.msra.mxu0 0.0
    %312 = vmatprep.subr.mxu0 0.0
    %313 = vmatpush2.msra.mxu0 0.0
    %314 = vmatprep.subr.mxu0 0.0
    %315 = vmatpush2.msra.mxu0 0.0
    %316 = vmatprep.subr.mxu0 0.0
    %317 = vmatpush2.msra.mxu0 0.0
    %318 = vmatprep.subr.mxu0 0.0
    %319 = vmatpush2.msra.mxu0 0.0
    %320 = vmatprep.subr.mxu0 0.0
    %321 = vmatpush2.msra.mxu0 0.0
    %322 = vmatprep.subr.mxu0 0.0
    %323 = vmatpush2.msra.mxu0 0.0
    %324 = vmatprep.subr.mxu0 0.0
    %325 = vmatpush2.msra.mxu0 0.0
    %326 = vmatprep.subr.mxu0 0.0
    %327 = vmatpush2.msra.mxu0 0.0
    %328 = vmatprep.subr.mxu0 0.0
    %329 = vmatpush2.msra.mxu0 0.0
    %330 = vmatprep.subr.mxu0 0.0
    %331 = vmatpush2.msra.mxu0 0.0
    %332 = vmatprep.subr.mxu0 0.0
    %333 = vmatpush2.msra.mxu0 0.0
    %334 = vmatprep.subr.mxu0 0.0
    %335 = vmatpush2.msra.mxu0 0.0
    %336 = vmatprep.subr.mxu0 0.0
    %337 = vmatpush2.msra.mxu0 0.0
    %338 = vmatprep.mubr.f32.mxu0 0.0
    %339 = vmatmul.mubr.f32.gmra.mxu0 %v256
    %v340 = vpop.f32.mrf.mxu0
    %v341 = vadd.f32 %v154, %v340
    %v342 = vpop.f32.mrf.mxu0
    %v343 = vadd.f32 %v158, %v342
    %344 = vdwg.mxu0
    %345 = vmatprep.subr.mxu0 0.0
    %346 = vmatpush1.msra.mxu0 0.0
    %347 = vmatprep.subr.mxu0 0.0
    %348 = vmatpush1.msra.mxu0 0.0
    %349 = vmatprep.subr.mxu0 0.0
    %350 = vmatpush1.msra.mxu0 0.0
    %351 = vmatprep.subr.mxu0 0.0
    %352 = vmatpush1.msra.mxu0 0.0
    %353 = vmatprep.subr.mxu0 0.0
    %354 = vmatpush1.msra.mxu0 0.0
    %355 = vmatprep.subr.mxu0 0.0
    %356 = vmatpush1.msra.mxu0 0.0
    %357 = vmatprep.subr.mxu0 0.0
    %358 = vmatpush1.msra.mxu0 0.0
    %359 = vmatprep.subr.mxu0 0.0
    %360 = vmatpush1.msra.mxu0 0.0
    %361 = vmatprep.subr.mxu0 0.0
    %362 = vmatpush1.msra.mxu0 0.0
    %363 = vmatprep.subr.mxu0 0.0
    %364 = vmatpush1.msra.mxu0 0.0
    %365 = vmatprep.subr.mxu0 0.0
    %366 = vmatpush1.msra.mxu0 0.0
    %367 = vmatprep.subr.mxu0 0.0
    %368 = vmatpush1.msra.mxu0 0.0
    %369 = vmatprep.subr.mxu0 0.0
    %370 = vmatpush1.msra.mxu0 0.0
    %371 = vmatprep.subr.mxu0 0.0
    %372 = vmatpush1.msra.mxu0 0.0
    %373 = vmatprep.subr.mxu0 0.0
    %374 = vmatpush1.msra.mxu0 0.0
    %375 = vmatprep.subr.mxu0 %v264
    %376 = vmatpush1.msra.mxu0 %v262
    %377 = vmatprep.subr.mxu0 0.0
    %378 = vmatpush2.msra.mxu0 0.0
    %379 = vmatprep.subr.mxu0 0.0
    %380 = vmatpush2.msra.mxu0 0.0
    %381 = vmatprep.subr.mxu0 0.0
    %382 = vmatpush2.msra.mxu0 0.0
    %383 = vmatprep.subr.mxu0 0.0
    %384 = vmatpush2.msra.mxu0 0.0
    %385 = vmatprep.subr.mxu0 0.0
    %386 = vmatpush2.msra.mxu0 0.0
    %387 = vmatprep.subr.mxu0 0.0
    %388 = vmatpush2.msra.mxu0 0.0
    %389 = vmatprep.subr.mxu0 0.0
    %390 = vmatpush2.msra.mxu0 0.0
    %391 = vmatprep.subr.mxu0 0.0
    %392 = vmatpush2.msra.mxu0 0.0
    %393 = vmatprep.subr.mxu0 0.0
    %394 = vmatpush2.msra.mxu0 0.0
    %395 = vmatprep.subr.mxu0 0.0
    %396 = vmatpush2.msra.mxu0 0.0
    %397 = vmatprep.subr.mxu0 0.0
    %398 = vmatpush2.msra.mxu0 0.0
    %399 = vmatprep.subr.mxu0 0.0
    %400 = vmatpush2.msra.mxu0 0.0
    %401 = vmatprep.subr.mxu0 0.0
    %402 = vmatpush2.msra.mxu0 0.0
    %403 = vmatprep.subr.mxu0 0.0
    %404 = vmatpush2.msra.mxu0 0.0
    %405 = vmatprep.subr.mxu0 0.0
    %406 = vmatpush2.msra.mxu0 0.0
    %407 = vmatprep.subr.mxu0 0.0
    %408 = vmatpush2.msra.mxu0 0.0
    %409 = vmatprep.mubr.f32.mxu0 0.0
    %410 = vmatmul.mubr.f32.gmra.mxu0 %v256
    %v411 = vpop.f32.mrf.mxu0
    %v412 = vadd.f32 %v162, %v411
    %v413 = vpop.f32.mrf.mxu0
    %v414 = vadd.f32 %v166, %v413
    %415 = vdwg.mxu0
    %416 = vmatprep.subr.mxu0 0.0
    %417 = vmatpush1.msra.mxu0 0.0
    %418 = vmatprep.subr.mxu0 0.0
    %419 = vmatpush1.msra.mxu0 0.0
    %420 = vmatprep.subr.mxu0 0.0
    %421 = vmatpush1.msra.mxu0 0.0
    %422 = vmatprep.subr.mxu0 0.0
    %423 = vmatpush1.msra.mxu0 0.0
    %424 = vmatprep.subr.mxu0 0.0
    %425 = vmatpush1.msra.mxu0 0.0
    %426 = vmatprep.subr.mxu0 0.0
    %427 = vmatpush1.msra.mxu0 0.0
    %428 = vmatprep.subr.mxu0 0.0
    %429 = vmatpush1.msra.mxu0 0.0
    %430 = vmatprep.subr.mxu0 0.0
    %431 = vmatpush1.msra.mxu0 0.0
    %432 = vmatprep.subr.mxu0 0.0
    %433 = vmatpush1.msra.mxu0 0.0
    %434 = vmatprep.subr.mxu0 0.0
    %435 = vmatpush1.msra.mxu0 0.0
    %436 = vmatprep.subr.mxu0 0.0
    %437 = vmatpush1.msra.mxu0 0.0
    %438 = vmatprep.subr.mxu0 0.0
    %439 = vmatpush1.msra.mxu0 0.0
    %440 = vmatprep.subr.mxu0 0.0
    %441 = vmatpush1.msra.mxu0 0.0
    %442 = vmatprep.subr.mxu0 0.0
    %443 = vmatpush1.msra.mxu0 0.0
    %444 = vmatprep.subr.mxu0 0.0
    %445 = vmatpush1.msra.mxu0 0.0
    %446 = vmatprep.subr.mxu0 %v268
    %447 = vmatpush1.msra.mxu0 %v266
    %448 = vmatprep.subr.mxu0 0.0
    %449 = vmatpush2.msra.mxu0 0.0
    %450 = vmatprep.subr.mxu0 0.0
    %451 = vmatpush2.msra.mxu0 0.0
    %452 = vmatprep.subr.mxu0 0.0
    %453 = vmatpush2.msra.mxu0 0.0
    %454 = vmatprep.subr.mxu0 0.0
    %455 = vmatpush2.msra.mxu0 0.0
    %456 = vmatprep.subr.mxu0 0.0
    %457 = vmatpush2.msra.mxu0 0.0
    %458 = vmatprep.subr.mxu0 0.0
    %459 = vmatpush2.msra.mxu0 0.0
    %460 = vmatprep.subr.mxu0 0.0
    %461 = vmatpush2.msra.mxu0 0.0
    %462 = vmatprep.subr.mxu0 0.0
    %463 = vmatpush2.msra.mxu0 0.0
    %464 = vmatprep.subr.mxu0 0.0
    %465 = vmatpush2.msra.mxu0 0.0
    %466 = vmatprep.subr.mxu0 0.0
    %467 = vmatpush2.msra.mxu0 0.0
    %468 = vmatprep.subr.mxu0 0.0
    %469 = vmatpush2.msra.mxu0 0.0
    %470 = vmatprep.subr.mxu0 0.0
    %471 = vmatpush2.msra.mxu0 0.0
    %472 = vmatprep.subr.mxu0 0.0
    %473 = vmatpush2.msra.mxu0 0.0
    %474 = vmatprep.subr.mxu0 0.0
    %475 = vmatpush2.msra.mxu0 0.0
    %476 = vmatprep.subr.mxu0 0.0
    %477 = vmatpush2.msra.mxu0 0.0
    %478 = vmatprep.subr.mxu0 0.0
    %479 = vmatpush2.msra.mxu0 0.0
    %480 = vmatprep.mubr.f32.mxu0 0.0
    %481 = vmatmul.mubr.f32.gmra.mxu0 %v256
    %v482 = vpop.f32.mrf.mxu0
    %v483 = vadd.f32 %v170, %v482
    %v484 = vpop.f32.mrf.mxu0
    %v485 = vadd.f32 %v174, %v484
    %486 = vdwg.mxu0
    %487 = vmatprep.subr.mxu0 0.0
    %488 = vmatpush1.msra.mxu0 0.0
    %489 = vmatprep.subr.mxu0 0.0
    %490 = vmatpush1.msra.mxu0 0.0
    %491 = vmatprep.subr.mxu0 0.0
    %492 = vmatpush1.msra.mxu0 0.0
    %493 = vmatprep.subr.mxu0 0.0
    %494 = vmatpush1.msra.mxu0 0.0
    %495 = vmatprep.subr.mxu0 0.0
    %496 = vmatpush1.msra.mxu0 0.0
    %497 = vmatprep.subr.mxu0 0.0
    %498 = vmatpush1.msra.mxu0 0.0
    %499 = vmatprep.subr.mxu0 0.0
    %500 = vmatpush1.msra.mxu0 0.0
    %501 = vmatprep.subr.mxu0 0.0
    %502 = vmatpush1.msra.mxu0 0.0
    %503 = vmatprep.subr.mxu0 0.0
    %504 = vmatpush1.msra.mxu0 0.0
    %505 = vmatprep.subr.mxu0 0.0
    %506 = vmatpush1.msra.mxu0 0.0
    %507 = vmatprep.subr.mxu0 0.0
    %508 = vmatpush1.msra.mxu0 0.0
    %509 = vmatprep.subr.mxu0 0.0
    %510 = vmatpush1.msra.mxu0 0.0
    %511 = vmatprep.subr.mxu0 0.0
    %512 = vmatpush1.msra.mxu0 0.0
    %513 = vmatprep.subr.mxu0 0.0
    %514 = vmatpush1.msra.mxu0 0.0
    %515 = vmatprep.subr.mxu0 0.0
    %516 = vmatpush1.msra.mxu0 0.0
    %517 = vmatprep.subr.mxu0 %v272
    %518 = vmatpush1.msra.mxu0 %v270
    %519 = vmatprep.subr.mxu0 0.0
    %520 = vmatpush2.msra.mxu0 0.0
    %521 = vmatprep.subr.mxu0 0.0
    %522 = vmatpush2.msra.mxu0 0.0
    %523 = vmatprep.subr.mxu0 0.0
    %524 = vmatpush2.msra.mxu0 0.0
    %525 = vmatprep.subr.mxu0 0.0
    %526 = vmatpush2.msra.mxu0 0.0
    %527 = vmatprep.subr.mxu0 0.0
    %528 = vmatpush2.msra.mxu0 0.0
    %529 = vmatprep.subr.mxu0 0.0
    %530 = vmatpush2.msra.mxu0 0.0
    %531 = vmatprep.subr.mxu0 0.0
    %532 = vmatpush2.msra.mxu0 0.0
    %533 = vmatprep.subr.mxu0 0.0
    %534 = vmatpush2.msra.mxu0 0.0
    %535 = vmatprep.subr.mxu0 0.0
    %536 = vmatpush2.msra.mxu0 0.0
    %537 = vmatprep.subr.mxu0 0.0
    %538 = vmatpush2.msra.mxu0 0.0
    %539 = vmatprep.subr.mxu0 0.0
    %540 = vmatpush2.msra.mxu0 0.0
    %541 = vmatprep.subr.mxu0 0.0
    %542 = vmatpush2.msra.mxu0 0.0
    %543 = vmatprep.subr.mxu0 0.0
    %544 = vmatpush2.msra.mxu0 0.0
    %545 = vmatprep.subr.mxu0 0.0
    %546 = vmatpush2.msra.mxu0 0.0
    %547 = vmatprep.subr.mxu0 0.0
    %548 = vmatpush2.msra.mxu0 0.0
    %549 = vmatprep.subr.mxu0 0.0
    %550 = vmatpush2.msra.mxu0 0.0
    %551 = vmatprep.mubr.f32.mxu0 0.0
    %552 = vmatmul.mubr.f32.gmra.mxu0 %v256
    %v553 = vpop.f32.mrf.mxu0
    %v554 = vadd.f32 %v178, %v553
    %v555 = vpop.f32.mrf.mxu0
    %v556 = vadd.f32 %v182, %v555
    %557 = vdwg.mxu0
    %v558 = vmax.f32 %v341, 0.0
    %v559 = vmax.f32 %v343, 0.0
    %v560 = vmax.f32 %v412, 0.0
    %v561 = vmax.f32 %v414, 0.0
    %v562 = vmax.f32 %v483, 0.0
    %v563 = vmax.f32 %v485, 0.0
    %v564 = vmax.f32 %v554, 0.0
    %v565 = vmax.f32 %v556, 0.0
    %v566 = vld [vmem:[#allocation8] sm:$0xff]
    %v567 = vld [vmem:[#allocation8 + $0x8] sm:$0xff]
    %v568 = vld [vmem:[#allocation8 + $0x10] sm:$0xff]
    %v569 = vld [vmem:[#allocation8 + $0x18] sm:$0xff]
    %v570 = vld [vmem:[#allocation8 + $0x20] sm:$0xff]
    %v571 = vld [vmem:[#allocation8 + $0x28] sm:$0xff]
    %v572 = vld [vmem:[#allocation8 + $0x30] sm:$0xff]
    %v573 = vld [vmem:[#allocation8 + $0x38] sm:$0xff]
    %v574 = vld [vmem:[#allocation8 + $0x40] sm:$0xff]
    %v575 = vld [vmem:[#allocation8 + $0x48] sm:$0xff]
    %v576 = vld [vmem:[#allocation8 + $0x50] sm:$0xff]
    %v577 = vld [vmem:[#allocation8 + $0x58] sm:$0xff]
    %v578 = vld [vmem:[#allocation8 + $0x60] sm:$0xff]
    %v579 = vld [vmem:[#allocation8 + $0x68] sm:$0xff]
    %v580 = vld [vmem:[#allocation8 + $0x70] sm:$0xff]
    %v581 = vld [vmem:[#allocation8 + $0x78] sm:$0xff]
    %v582 = vld [vmem:[#allocation8 + $0x80] sm:$0xff]
    %v583 = vld [vmem:[#allocation8 + $0x88] sm:$0xff]
    %v584 = vld [vmem:[#allocation8 + $0x90] sm:$0xff]
    %v585 = vld [vmem:[#allocation8 + $0x98] sm:$0xff]
    %v586 = vld [vmem:[#allocation8 + $0xa0] sm:$0xff]
    %v587 = vld [vmem:[#allocation8 + $0xa8] sm:$0xff]
    %v588 = vld [vmem:[#allocation8 + $0xb0] sm:$0xff]
    %v589 = vld [vmem:[#allocation8 + $0xb8] sm:$0xff]
    %v590 = vld [vmem:[#allocation8 + $0xc0] sm:$0xff]
    %v591 = vld [vmem:[#allocation8 + $0xc8] sm:$0xff]
    %v592 = vld [vmem:[#allocation8 + $0xd0] sm:$0xff]
    %v593 = vld [vmem:[#allocation8 + $0xd8] sm:$0xff]
    %v594 = vld [vmem:[#allocation8 + $0xe0] sm:$0xff]
    %v595 = vld [vmem:[#allocation8 + $0xe8] sm:$0xff]
    %v596 = vld [vmem:[#allocation8 + $0xf0] sm:$0xff]
    %v597 = vld [vmem:[#allocation8 + $0xf8] sm:$0xff]
    %v598 = vld [vmem:[#allocation8 + $0x100] sm:$0xff]
    %v599 = vld [vmem:[#allocation8 + $0x108] sm:$0xff]
    %v600 = vld [vmem:[#allocation8 + $0x110] sm:$0xff]
    %v601 = vld [vmem:[#allocation8 + $0x118] sm:$0xff]
    %v602 = vld [vmem:[#allocation8 + $0x120] sm:$0xff]
    %v603 = vld [vmem:[#allocation8 + $0x128] sm:$0xff]
    %v604 = vld [vmem:[#allocation8 + $0x130] sm:$0xff]
    %v605 = vld [vmem:[#allocation8 + $0x138] sm:$0xff]
    %v606 = vld [vmem:[#allocation8 + $0x140] sm:$0xff]
    %v607 = vld [vmem:[#allocation8 + $0x148] sm:$0xff]
    %v608 = vld [vmem:[#allocation8 + $0x150] sm:$0xff]
    %v609 = vld [vmem:[#allocation8 + $0x158] sm:$0xff]
    %v610 = vld [vmem:[#allocation8 + $0x160] sm:$0xff]
    %v611 = vld [vmem:[#allocation8 + $0x168] sm:$0xff]
    %v612 = vld [vmem:[#allocation8 + $0x170] sm:$0xff]
    %v613 = vld [vmem:[#allocation8 + $0x178] sm:$0xff]
    %v614 = vld [vmem:[#allocation8 + $0x180] sm:$0xff]
    %v615 = vld [vmem:[#allocation8 + $0x188] sm:$0xff]
    %v616 = vld [vmem:[#allocation8 + $0x190] sm:$0xff]
    %v617 = vld [vmem:[#allocation8 + $0x198] sm:$0xff]
    %v618 = vld [vmem:[#allocation8 + $0x1a0] sm:$0xff]
    %v619 = vld [vmem:[#allocation8 + $0x1a8] sm:$0xff]
    %v620 = vld [vmem:[#allocation8 + $0x1b0] sm:$0xff]
    %v621 = vld [vmem:[#allocation8 + $0x1b8] sm:$0xff]
    %v622 = vld [vmem:[#allocation8 + $0x1c0] sm:$0xff]
    %v623 = vld [vmem:[#allocation8 + $0x1c8] sm:$0xff]
    %v624 = vld [vmem:[#allocation8 + $0x1d0] sm:$0xff]
    %v625 = vld [vmem:[#allocation8 + $0x1d8] sm:$0xff]
    %v626 = vld [vmem:[#allocation8 + $0x1e0] sm:$0xff]
    %v627 = vld [vmem:[#allocation8 + $0x1e8] sm:$0xff]
    %v628 = vld [vmem:[#allocation8 + $0x1f0] sm:$0xff]
    %v629 = vld [vmem:[#allocation8 + $0x1f8] sm:$0xff]
    %v630 = vld [vmem:[#allocation8 + $0x200] sm:$0xff]
    %v631 = vld [vmem:[#allocation8 + $0x208] sm:$0xff]
    %v632 = vld [vmem:[#allocation8 + $0x210] sm:$0xff]
    %v633 = vld [vmem:[#allocation8 + $0x218] sm:$0xff]
    %v634 = vld [vmem:[#allocation8 + $0x220] sm:$0xff]
    %v635 = vld [vmem:[#allocation8 + $0x228] sm:$0xff]
    %v636 = vld [vmem:[#allocation8 + $0x230] sm:$0xff]
    %v637 = vld [vmem:[#allocation8 + $0x238] sm:$0xff]
    %v638 = vld [vmem:[#allocation8 + $0x240] sm:$0xff]
    %v639 = vld [vmem:[#allocation8 + $0x248] sm:$0xff]
    %v640 = vld [vmem:[#allocation8 + $0x250] sm:$0xff]
    %v641 = vld [vmem:[#allocation8 + $0x258] sm:$0xff]
    %v642 = vld [vmem:[#allocation8 + $0x260] sm:$0xff]
    %v643 = vld [vmem:[#allocation8 + $0x268] sm:$0xff]
    %v644 = vld [vmem:[#allocation8 + $0x270] sm:$0xff]
    %v645 = vld [vmem:[#allocation8 + $0x278] sm:$0xff]
    %v646 = vld [vmem:[#allocation8 + $0x280] sm:$0xff]
    %v647 = vld [vmem:[#allocation8 + $0x288] sm:$0xff]
    %v648 = vld [vmem:[#allocation8 + $0x290] sm:$0xff]
    %v649 = vld [vmem:[#allocation8 + $0x298] sm:$0xff]
    %v650 = vld [vmem:[#allocation8 + $0x2a0] sm:$0xff]
    %v651 = vld [vmem:[#allocation8 + $0x2a8] sm:$0xff]
    %v652 = vld [vmem:[#allocation8 + $0x2b0] sm:$0xff]
    %v653 = vld [vmem:[#allocation8 + $0x2b8] sm:$0xff]
    %v654 = vld [vmem:[#allocation8 + $0x2c0] sm:$0xff]
    %v655 = vld [vmem:[#allocation8 + $0x2c8] sm:$0xff]
    %v656 = vld [vmem:[#allocation8 + $0x2d0] sm:$0xff]
    %v657 = vld [vmem:[#allocation8 + $0x2d8] sm:$0xff]
    %v658 = vld [vmem:[#allocation8 + $0x2e0] sm:$0xff]
    %v659 = vld [vmem:[#allocation8 + $0x2e8] sm:$0xff]
    %v660 = vld [vmem:[#allocation8 + $0x2f0] sm:$0xff]
    %v661 = vld [vmem:[#allocation8 + $0x2f8] sm:$0xff]
    %v662 = vld [vmem:[#allocation8 + $0x300] sm:$0xff]
    %v663 = vld [vmem:[#allocation8 + $0x308] sm:$0xff]
    %v664 = vld [vmem:[#allocation8 + $0x310] sm:$0xff]
    %v665 = vld [vmem:[#allocation8 + $0x318] sm:$0xff]
    %v666 = vld [vmem:[#allocation8 + $0x320] sm:$0xff]
    %v667 = vld [vmem:[#allocation8 + $0x328] sm:$0xff]
    %v668 = vld [vmem:[#allocation8 + $0x330] sm:$0xff]
    %v669 = vld [vmem:[#allocation8 + $0x338] sm:$0xff]
    %v670 = vld [vmem:[#allocation8 + $0x340] sm:$0xff]
    %v671 = vld [vmem:[#allocation8 + $0x348] sm:$0xff]
    %v672 = vld [vmem:[#allocation8 + $0x350] sm:$0xff]
    %v673 = vld [vmem:[#allocation8 + $0x358] sm:$0xff]
    %v674 = vld [vmem:[#allocation8 + $0x360] sm:$0xff]
    %v675 = vld [vmem:[#allocation8 + $0x368] sm:$0xff]
    %v676 = vld [vmem:[#allocation8 + $0x370] sm:$0xff]
    %v677 = vld [vmem:[#allocation8 + $0x378] sm:$0xff]
    %v678 = vld [vmem:[#allocation8 + $0x380] sm:$0xff]
    %v679 = vld [vmem:[#allocation8 + $0x388] sm:$0xff]
    %v680 = vld [vmem:[#allocation8 + $0x390] sm:$0xff]
    %v681 = vld [vmem:[#allocation8 + $0x398] sm:$0xff]
    %v682 = vld [vmem:[#allocation8 + $0x3a0] sm:$0xff]
    %v683 = vld [vmem:[#allocation8 + $0x3a8] sm:$0xff]
    %v684 = vld [vmem:[#allocation8 + $0x3b0] sm:$0xff]
    %v685 = vld [vmem:[#allocation8 + $0x3b8] sm:$0xff]
    %v686 = vld [vmem:[#allocation8 + $0x3c0] sm:$0xff]
    %v687 = vld [vmem:[#allocation8 + $0x3c8] sm:$0xff]
    %v688 = vld [vmem:[#allocation8 + $0x3d0] sm:$0xff]
    %v689 = vld [vmem:[#allocation8 + $0x3d8] sm:$0xff]
    %v690 = vld [vmem:[#allocation8 + $0x3e0] sm:$0xff]
    %v691 = vld [vmem:[#allocation8 + $0x3e8] sm:$0xff]
    %v692 = vld [vmem:[#allocation8 + $0x3f0] sm:$0xff]
    %v693 = vld [vmem:[#allocation8 + $0x3f8] sm:$0xff]
    %v694 = vld [vmem:[%s4] sm:$0x1]
    %v696 = vlaneseq
    %v697 = vshrl.u32 %v696, 7
    %v698 = vsub.s32 0, %v697
    %v699 = vrot.slane %v694, %v698
    %701 = vmatprep.subr.mxu0 0.0
    %702 = vmatpush1.msra.mxu0 %v581
    %703 = vmatprep.subr.mxu0 0.0
    %704 = vmatpush1.msra.mxu0 %v580
    %705 = vmatprep.subr.mxu0 0.0
    %706 = vmatpush1.msra.mxu0 %v579
    %707 = vmatprep.subr.mxu0 0.0
    %708 = vmatpush1.msra.mxu0 %v578
    %709 = vmatprep.subr.mxu0 0.0
    %710 = vmatpush1.msra.mxu0 %v577
    %711 = vmatprep.subr.mxu0 0.0
    %712 = vmatpush1.msra.mxu0 %v576
    %713 = vmatprep.subr.mxu0 0.0
    %714 = vmatpush1.msra.mxu0 %v575
    %715 = vmatprep.subr.mxu0 0.0
    %716 = vmatpush1.msra.mxu0 %v574
    %717 = vmatprep.subr.mxu0 0.0
    %718 = vmatpush1.msra.mxu0 %v573
    %719 = vmatprep.subr.mxu0 0.0
    %720 = vmatpush1.msra.mxu0 %v572
    %721 = vmatprep.subr.mxu0 0.0
    %722 = vmatpush1.msra.mxu0 %v571
    %723 = vmatprep.subr.mxu0 0.0
    %724 = vmatpush1.msra.mxu0 %v570
    %725 = vmatprep.subr.mxu0 0.0
    %726 = vmatpush1.msra.mxu0 %v569
    %727 = vmatprep.subr.mxu0 0.0
    %728 = vmatpush1.msra.mxu0 %v568
    %729 = vmatprep.subr.mxu0 0.0
    %730 = vmatpush1.msra.mxu0 %v567
    %731 = vmatprep.subr.mxu0 0.0
    %732 = vmatpush1.msra.mxu0 %v566
    %733 = vmatprep.subr.mxu0 0.0
    %734 = vmatpush2.msra.mxu0 %v597
    %735 = vmatprep.subr.mxu0 0.0
    %736 = vmatpush2.msra.mxu0 %v596
    %737 = vmatprep.subr.mxu0 0.0
    %738 = vmatpush2.msra.mxu0 %v595
    %739 = vmatprep.subr.mxu0 0.0
    %740 = vmatpush2.msra.mxu0 %v594
    %741 = vmatprep.subr.mxu0 0.0
    %742 = vmatpush2.msra.mxu0 %v593
    %743 = vmatprep.subr.mxu0 0.0
    %744 = vmatpush2.msra.mxu0 %v592
    %745 = vmatprep.subr.mxu0 0.0
    %746 = vmatpush2.msra.mxu0 %v591
    %747 = vmatprep.subr.mxu0 0.0
    %748 = vmatpush2.msra.mxu0 %v590
    %749 = vmatprep.subr.mxu0 0.0
    %750 = vmatpush2.msra.mxu0 %v589
    %751 = vmatprep.subr.mxu0 0.0
    %752 = vmatpush2.msra.mxu0 %v588
    %753 = vmatprep.subr.mxu0 0.0
    %754 = vmatpush2.msra.mxu0 %v587
    %755 = vmatprep.subr.mxu0 0.0
    %756 = vmatpush2.msra.mxu0 %v586
    %757 = vmatprep.subr.mxu0 0.0
    %758 = vmatpush2.msra.mxu0 %v585
    %759 = vmatprep.subr.mxu0 0.0
    %760 = vmatpush2.msra.mxu0 %v584
    %761 = vmatprep.subr.mxu0 0.0
    %762 = vmatpush2.msra.mxu0 %v583
    %763 = vmatprep.subr.mxu0 0.0
    %764 = vmatpush2.msra.mxu0 %v582
    %765 = vmatprep.mubr.f32.mxu0 %v559
    %766 = vmatmul.mubr.f32.gmra.mxu0 %v558
    %v767 = vpop.f32.mrf.mxu0
    %v768 = vadd.f32 %v699, %v767
    %v769 = vpop.f32.mrf.mxu0
    %770 = vdwg.mxu0
    %771 = vmatprep.subr.mxu0 0.0
    %772 = vmatpush1.msra.mxu0 %v613
    %773 = vmatprep.subr.mxu0 0.0
    %774 = vmatpush1.msra.mxu0 %v612
    %775 = vmatprep.subr.mxu0 0.0
    %776 = vmatpush1.msra.mxu0 %v611
    %777 = vmatprep.subr.mxu0 0.0
    %778 = vmatpush1.msra.mxu0 %v610
    %779 = vmatprep.subr.mxu0 0.0
    %780 = vmatpush1.msra.mxu0 %v609
    %781 = vmatprep.subr.mxu0 0.0
    %782 = vmatpush1.msra.mxu0 %v608
    %783 = vmatprep.subr.mxu0 0.0
    %784 = vmatpush1.msra.mxu0 %v607
    %785 = vmatprep.subr.mxu0 0.0
    %786 = vmatpush1.msra.mxu0 %v606
    %787 = vmatprep.subr.mxu0 0.0
    %788 = vmatpush1.msra.mxu0 %v605
    %789 = vmatprep.subr.mxu0 0.0
    %790 = vmatpush1.msra.mxu0 %v604
    %791 = vmatprep.subr.mxu0 0.0
    %792 = vmatpush1.msra.mxu0 %v603
    %793 = vmatprep.subr.mxu0 0.0
    %794 = vmatpush1.msra.mxu0 %v602
    %795 = vmatprep.subr.mxu0 0.0
    %796 = vmatpush1.msra.mxu0 %v601
    %797 = vmatprep.subr.mxu0 0.0
    %798 = vmatpush1.msra.mxu0 %v600
    %799 = vmatprep.subr.mxu0 0.0
    %800 = vmatpush1.msra.mxu0 %v599
    %801 = vmatprep.subr.mxu0 0.0
    %802 = vmatpush1.msra.mxu0 %v598
    %803 = vmatprep.subr.mxu0 0.0
    %804 = vmatpush2.msra.mxu0 %v629
    %805 = vmatprep.subr.mxu0 0.0
    %806 = vmatpush2.msra.mxu0 %v628
    %807 = vmatprep.subr.mxu0 0.0
    %808 = vmatpush2.msra.mxu0 %v627
    %809 = vmatprep.subr.mxu0 0.0
    %810 = vmatpush2.msra.mxu0 %v626
    %811 = vmatprep.subr.mxu0 0.0
    %812 = vmatpush2.msra.mxu0 %v625
    %813 = vmatprep.subr.mxu0 0.0
    %814 = vmatpush2.msra.mxu0 %v624
    %815 = vmatprep.subr.mxu0 0.0
    %816 = vmatpush2.msra.mxu0 %v623
    %817 = vmatprep.subr.mxu0 0.0
    %818 = vmatpush2.msra.mxu0 %v622
    %819 = vmatprep.subr.mxu0 0.0
    %820 = vmatpush2.msra.mxu0 %v621
    %821 = vmatprep.subr.mxu0 0.0
    %822 = vmatpush2.msra.mxu0 %v620
    %823 = vmatprep.subr.mxu0 0.0
    %824 = vmatpush2.msra.mxu0 %v619
    %825 = vmatprep.subr.mxu0 0.0
    %826 = vmatpush2.msra.mxu0 %v618
    %827 = vmatprep.subr.mxu0 0.0
    %828 = vmatpush2.msra.mxu0 %v617
    %829 = vmatprep.subr.mxu0 0.0
    %830 = vmatpush2.msra.mxu0 %v616
    %831 = vmatprep.subr.mxu0 0.0
    %832 = vmatpush2.msra.mxu0 %v615
    %833 = vmatprep.subr.mxu0 0.0
    %834 = vmatpush2.msra.mxu0 %v614
    %835 = vmatprep.mubr.f32.mxu0 %v561
    %836 = vmatmul.mubr.f32.gmra.mxu0 %v560
    %v837 = vpop.f32.mrf.mxu0
    %v838 = vadd.f32 %v768, %v837
    %v839 = vpop.f32.mrf.mxu0
    %840 = vdwg.mxu0
    %841 = vmatprep.subr.mxu0 0.0
    %842 = vmatpush1.msra.mxu0 %v645
    %843 = vmatprep.subr.mxu0 0.0
    %844 = vmatpush1.msra.mxu0 %v644
    %845 = vmatprep.subr.mxu0 0.0
    %846 = vmatpush1.msra.mxu0 %v643
    %847 = vmatprep.subr.mxu0 0.0
    %848 = vmatpush1.msra.mxu0 %v642
    %849 = vmatprep.subr.mxu0 0.0
    %850 = vmatpush1.msra.mxu0 %v641
    %851 = vmatprep.subr.mxu0 0.0
    %852 = vmatpush1.msra.mxu0 %v640
    %853 = vmatprep.subr.mxu0 0.0
    %854 = vmatpush1.msra.mxu0 %v639
    %855 = vmatprep.subr.mxu0 0.0
    %856 = vmatpush1.msra.mxu0 %v638
    %857 = vmatprep.subr.mxu0 0.0
    %858 = vmatpush1.msra.mxu0 %v637
    %859 = vmatprep.subr.mxu0 0.0
    %860 = vmatpush1.msra.mxu0 %v636
    %861 = vmatprep.subr.mxu0 0.0
    %862 = vmatpush1.msra.mxu0 %v635
    %863 = vmatprep.subr.mxu0 0.0
    %864 = vmatpush1.msra.mxu0 %v634
    %865 = vmatprep.subr.mxu0 0.0
    %866 = vmatpush1.msra.mxu0 %v633
    %867 = vmatprep.subr.mxu0 0.0
    %868 = vmatpush1.msra.mxu0 %v632
    %869 = vmatprep.subr.mxu0 0.0
    %870 = vmatpush1.msra.mxu0 %v631
    %871 = vmatprep.subr.mxu0 0.0
    %872 = vmatpush1.msra.mxu0 %v630
    %873 = vmatprep.subr.mxu0 0.0
    %874 = vmatpush2.msra.mxu0 %v661
    %875 = vmatprep.subr.mxu0 0.0
    %876 = vmatpush2.msra.mxu0 %v660
    %877 = vmatprep.subr.mxu0 0.0
    %878 = vmatpush2.msra.mxu0 %v659
    %879 = vmatprep.subr.mxu0 0.0
    %880 = vmatpush2.msra.mxu0 %v658
    %881 = vmatprep.subr.mxu0 0.0
    %882 = vmatpush2.msra.mxu0 %v657
    %883 = vmatprep.subr.mxu0 0.0
    %884 = vmatpush2.msra.mxu0 %v656
    %885 = vmatprep.subr.mxu0 0.0
    %886 = vmatpush2.msra.mxu0 %v655
    %887 = vmatprep.subr.mxu0 0.0
    %888 = vmatpush2.msra.mxu0 %v654
    %889 = vmatprep.subr.mxu0 0.0
    %890 = vmatpush2.msra.mxu0 %v653
    %891 = vmatprep.subr.mxu0 0.0
    %892 = vmatpush2.msra.mxu0 %v652
    %893 = vmatprep.subr.mxu0 0.0
    %894 = vmatpush2.msra.mxu0 %v651
    %895 = vmatprep.subr.mxu0 0.0
    %896 = vmatpush2.msra.mxu0 %v650
    %897 = vmatprep.subr.mxu0 0.0
    %898 = vmatpush2.msra.mxu0 %v649
    %899 = vmatprep.subr.mxu0 0.0
    %900 = vmatpush2.msra.mxu0 %v648
    %901 = vmatprep.subr.mxu0 0.0
    %902 = vmatpush2.msra.mxu0 %v647
    %903 = vmatprep.subr.mxu0 0.0
    %904 = vmatpush2.msra.mxu0 %v646
    %905 = vmatprep.mubr.f32.mxu0 %v563
    %906 = vmatmul.mubr.f32.gmra.mxu0 %v562
    %v907 = vpop.f32.mrf.mxu0
    %v908 = vadd.f32 %v838, %v907
    %v909 = vpop.f32.mrf.mxu0
    %910 = vdwg.mxu0
    %911 = vmatprep.subr.mxu0 0.0
    %912 = vmatpush1.msra.mxu0 %v677
    %913 = vmatprep.subr.mxu0 0.0
    %914 = vmatpush1.msra.mxu0 %v676
    %915 = vmatprep.subr.mxu0 0.0
    %916 = vmatpush1.msra.mxu0 %v675
    %917 = vmatprep.subr.mxu0 0.0
    %918 = vmatpush1.msra.mxu0 %v674
    %919 = vmatprep.subr.mxu0 0.0
    %920 = vmatpush1.msra.mxu0 %v673
    %921 = vmatprep.subr.mxu0 0.0
    %922 = vmatpush1.msra.mxu0 %v672
    %923 = vmatprep.subr.mxu0 0.0
    %924 = vmatpush1.msra.mxu0 %v671
    %925 = vmatprep.subr.mxu0 0.0
    %926 = vmatpush1.msra.mxu0 %v670
    %927 = vmatprep.subr.mxu0 0.0
    %928 = vmatpush1.msra.mxu0 %v669
    %929 = vmatprep.subr.mxu0 0.0
    %930 = vmatpush1.msra.mxu0 %v668
    %931 = vmatprep.subr.mxu0 0.0
    %932 = vmatpush1.msra.mxu0 %v667
    %933 = vmatprep.subr.mxu0 0.0
    %934 = vmatpush1.msra.mxu0 %v666
    %935 = vmatprep.subr.mxu0 0.0
    %936 = vmatpush1.msra.mxu0 %v665
    %937 = vmatprep.subr.mxu0 0.0
    %938 = vmatpush1.msra.mxu0 %v664
    %939 = vmatprep.subr.mxu0 0.0
    %940 = vmatpush1.msra.mxu0 %v663
    %941 = vmatprep.subr.mxu0 0.0
    %942 = vmatpush1.msra.mxu0 %v662
    %943 = vmatprep.subr.mxu0 0.0
    %944 = vmatpush2.msra.mxu0 %v693
    %945 = vmatprep.subr.mxu0 0.0
    %946 = vmatpush2.msra.mxu0 %v692
    %947 = vmatprep.subr.mxu0 0.0
    %948 = vmatpush2.msra.mxu0 %v691
    %949 = vmatprep.subr.mxu0 0.0
    %950 = vmatpush2.msra.mxu0 %v690
    %951 = vmatprep.subr.mxu0 0.0
    %952 = vmatpush2.msra.mxu0 %v689
    %953 = vmatprep.subr.mxu0 0.0
    %954 = vmatpush2.msra.mxu0 %v688
    %955 = vmatprep.subr.mxu0 0.0
    %956 = vmatpush2.msra.mxu0 %v687
    %957 = vmatprep.subr.mxu0 0.0
    %958 = vmatpush2.msra.mxu0 %v686
    %959 = vmatprep.subr.mxu0 0.0
    %960 = vmatpush2.msra.mxu0 %v685
    %961 = vmatprep.subr.mxu0 0.0
    %962 = vmatpush2.msra.mxu0 %v684
    %963 = vmatprep.subr.mxu0 0.0
    %964 = vmatpush2.msra.mxu0 %v683
    %965 = vmatprep.subr.mxu0 0.0
    %966 = vmatpush2.msra.mxu0 %v682
    %967 = vmatprep.subr.mxu0 0.0
    %968 = vmatpush2.msra.mxu0 %v681
    %969 = vmatprep.subr.mxu0 0.0
    %970 = vmatpush2.msra.mxu0 %v680
    %971 = vmatprep.subr.mxu0 0.0
    %972 = vmatpush2.msra.mxu0 %v679
    %973 = vmatprep.subr.mxu0 0.0
    %974 = vmatpush2.msra.mxu0 %v678
    %975 = vmatprep.mubr.f32.mxu0 %v565
    %976 = vmatmul.mubr.f32.gmra.mxu0 %v564
    %v977 = vpop.f32.mrf.mxu0
    %v978 = vadd.f32 %v908, %v977
    %v979 = vpop.f32.mrf.mxu0
    %980 = vdwg.mxu0
    %981 = vst [vmem:[#allocation10] sm:$0xff] %v978
    // Predicated region
    $region38: #{tpu_custom_call.1} parent=1 // pred_check
      _
    $region39: #{tpu_custom_call.1} parent=1 // pred_check_branch
      %983 = sbr.rel (0) target = $region41
    $region40: #{tpu_custom_call.1} parent=1 // pred_region
      %s985 = ssub.s32 128, 128
      %986 = vsyncadd [#allocation4], %s985
      %s988 = sshll.u32 [#allocation10], 4
      %s989 = int_to_ptr.vmem [resolvable:$true] %s988
      %991 = dma.vmem_to_hbm [thread:$0]  %s989, 128, %s5, [#allocation4]
    $region41: #{tpu_custom_call.1} parent=1 // pred_fallthru
      _
    // Predicated region
    $region42: #{tpu_custom_call.1} parent=1 // pred_check
      _
    $region43: #{tpu_custom_call.1} parent=1 // pred_check_branch
      %993 = sbr.rel (0) target = $region45
    $region44: #{tpu_custom_call.1} parent=1 // pred_region
      %994 = dma.done [#allocation4], 128
    $region45: #{tpu_custom_call.1} parent=1 // pred_fallthru
      _
    %995 = vsyncpa [#allocation3], 1
    %996 = vsyncpa [#allocation6], 1
    %997 = vsyncpa [#allocation9], 1
    %998 = vsyncpa [#allocation4], 1

</llo_original>
